<compile_context>
chip_gen: v7x
topology: tpu7x:2x2x1
jax: 0.10.0
libtpu: 0.0.40
codegen_flags: <defaults>
</compile_context>

<pallas_src>
import jax
import jax.numpy as jnp
from jax.experimental import pallas as pl
from jax.experimental.pallas import tpu as pltpu

_LANES = 512                # lane-dense last dim (large multiple of 128 -> unmasked vst)
_MAX_TILE_BYTES = 4 << 20   # ~4 MiB per array per pipeline buffer
_VMEM_LIMIT = 48 << 20      # 4 arrays x 2 bufs x 4 MiB = 32 MiB + headroom; < v7x 64 MiB
_TINY_BYTES = 64 << 10      # below this, plain fused XLA beats a kernel launch


def _kanalysis_kernel(q_ref, p_ref, dq_ref, dp_ref):
    # dK/dq = q * (p^2 + 1);  dK/dp = p * (q^2 + 1)   (elementwise, VPU-only)
    q = q_ref[...].astype(jnp.float32)
    p = p_ref[...].astype(jnp.float32)
    dq_ref[...] = (q * (p * p + 1.0)).astype(dq_ref.dtype)
    dp_ref[...] = (p * (q * q + 1.0)).astype(dp_ref.dtype)


def _round_up(x, m):
    return (x + m - 1) // m * m


def _grads_jnp(q, p):
    # Tiny-input early-out: same closed-form math, fused by XLA.
    qf = q.astype(jnp.float32)
    pf = p.astype(jnp.float32)
    dq = (qf * (pf * pf + 1.0)).astype(q.dtype)
    dp = (pf * (qf * qf + 1.0)).astype(p.dtype)
    return dq, dp


def kanalysis(q, p):
    """Pallas implementation of KAnalysis.forward: returns (dq, dp)."""
    assert q.shape == p.shape and q.dtype == p.dtype
    orig_shape = q.shape
    dtype = q.dtype
    itemsize = jnp.dtype(dtype).itemsize
    n = q.size

    # --- tiny inputs: launch overhead dominates; let XLA fuse it -------------
    if n * itemsize < _TINY_BYTES:
        return _grads_jnp(q, p)

    # --- lane-dense layout plumbing ------------------------------------------
    # Fast path (n % 512 == 0): reshape is zero-copy; ragged row-edge blocks are
    # masked by Pallas.  Slow path: pad only to the next lane multiple.
    rows = pl.cdiv(n, _LANES)
    n_pad = rows * _LANES

    q_flat = q.reshape(-1)
    p_flat = p.reshape(-1)
    if n_pad != n:
        # TODO(synk): truly ragged sizes still cost one extra HBM pass for pad/slice.
        q_flat = jnp.pad(q_flat, (0, n_pad - n))
        p_flat = jnp.pad(p_flat, (0, n_pad - n))
    q2 = q_flat.reshape(rows, _LANES)
    p2 = p_flat.reshape(rows, _LANES)

    # --- tile sizing ----------------------------------------------------------
    sub = max(8, (8 * 4) // itemsize)                 # sublane packing: 8 f32 / 16 bf16 / 32 i8
    cap_rows = max(sub, (_MAX_TILE_BYTES // (_LANES * itemsize)) // sub * sub)
    tile_rows = min(cap_rows, _round_up(rows, sub))
    # Keep >= 2 grid steps whenever the input can be split, so the "parallel"
    # axis gives v7x's two TensorCores something to shard.
    while tile_rows > sub and pl.cdiv(rows, tile_rows) < 2:
        tile_rows = _round_up(tile_rows // 2, sub)

    grid = (pl.cdiv(rows, tile_rows),)
    spec = pl.BlockSpec((tile_rows, _LANES), lambda i: (i, 0))
    out_sds = jax.ShapeDtypeStruct((rows, _LANES), dtype)

    cost = pl.CostEstimate(
        flops=6 * n_pad,                          # 3 flops per output element
        bytes_accessed=4 * n_pad * itemsize,      # 2 reads + 2 writes
        transcendentals=0,
    )

    dq2, dp2 = pl.pallas_call(
        _kanalysis_kernel,
        out_shape=(out_sds, out_sds),
        grid=grid,
        in_specs=[spec, spec],
        out_specs=(spec, spec),
        compiler_params=pltpu.CompilerParams(
            dimension_semantics=("parallel",),    # shard rows across v7x's 2 TCs
            vmem_limit_bytes=_VMEM_LIMIT,
        ),
        cost_estimate=cost,
    )(q2, p2)

    def from_slab(x):
        x = x.reshape(-1)
        if n_pad != n:
            x = x[:n]
        return x.reshape(orig_shape)

    return from_slab(dq2), from_slab(dp2)


def _reference(q, p):
    # Pure-JAX reference via autodiff, mirroring the PyTorch autograd path.
    def K(q, p):
        return jnp.sum(0.5 * (q.astype(jnp.float32) ** 2 + 1.0)
                       * (p.astype(jnp.float32) ** 2 + 1.0))
    dq = jax.grad(K, argnums=0)(q, p)
    dp = jax.grad(K, argnums=1)(q, p)
    return dq, dp


if __name__ == "__main__":
    key = jax.random.PRNGKey(0)

    cases = [
        # (shape, dtype, rtol, atol)
        ((2, 4, 16, 16), jnp.float32, 1e-5, 1e-5),   # canonical small shape: tiny fused-XLA path
        ((8, 4, 32, 32), jnp.float32, 1e-5, 1e-5),   # Pallas zero-copy fast path, grid=(2,)
        ((2, 5, 41, 53), jnp.float32, 1e-5, 1e-5),   # Pallas ragged path (pad-to-lane + edge mask)
        ((8, 4, 32, 32), jnp.bfloat16, 3e-2, 3e-2),  # bf16 inputs, f32 in-kernel math
    ]

    for idx, (shape, dtype, rtol, atol) in enumerate(cases):
        kq, kp = jax.random.split(jax.random.fold_in(key, idx))
        q = jax.random.normal(kq, shape, dtype=jnp.float32).astype(dtype)
        p = jax.random.normal(kp, shape, dtype=jnp.float32).astype(dtype)

        dq, dp = kanalysis(q, p)
        jax.block_until_ready((dq, dp))

        dq_ref, dp_ref = _reference(q, p)
        assert dq.shape == shape and dp.shape == shape
        assert dq.dtype == dtype and dp.dtype == dtype
        assert jnp.allclose(dq.astype(jnp.float32), dq_ref.astype(jnp.float32),
                            rtol=rtol, atol=atol)
        assert jnp.allclose(dp.astype(jnp.float32), dp_ref.astype(jnp.float32),
                            rtol=rtol, atol=atol)

    print("KERNEL_OK")
</pallas_src>

<mosaic_0001>
module attributes {stable_mosaic.version = 11 : i64} {
  func.func @_kanalysis_kernel(%arg0: i32, %arg1: memref<32x512xf32, #tpu.memory_space<vmem>>, %arg2: memref<32x512xf32, #tpu.memory_space<vmem>>, %arg3: memref<32x512xf32, #tpu.memory_space<vmem>>, %arg4: memref<32x512xf32, #tpu.memory_space<vmem>>) attributes {dimension_semantics = [#tpu.dimension_semantics<parallel>], iteration_bounds = array<i64: 2>, scalar_prefetch = 0 : i64, scratch_operands = 0 : i64, tpu.core_type = #tpu.core_type<tc>, window_params = [{transform_indices = @transform_0, window_bounds = array<i64: 32, 512>}, {transform_indices = @transform_1, window_bounds = array<i64: 32, 512>}, {transform_indices = @transform_2, window_bounds = array<i64: 32, 512>}, {transform_indices = @transform_3, window_bounds = array<i64: 32, 512>}]} {
    %c0 = arith.constant 0 : index
    %c0_0 = arith.constant 0 : index
    %0 = vector.load %arg1[%c0, %c0_0] : memref<32x512xf32, #tpu.memory_space<vmem>>, vector<32x512xf32>
    %c0_1 = arith.constant 0 : index
    %c0_2 = arith.constant 0 : index
    %1 = vector.load %arg2[%c0_1, %c0_2] : memref<32x512xf32, #tpu.memory_space<vmem>>, vector<32x512xf32>
    %2 = arith.mulf %1, %1 : vector<32x512xf32>
    %cst = arith.constant 1.000000e+00 : f32
    %3 = vector.broadcast %cst : f32 to vector<32x512xf32>
    %4 = arith.addf %2, %3 : vector<32x512xf32>
    %5 = arith.mulf %0, %4 : vector<32x512xf32>
    %c0_3 = arith.constant 0 : index
    %c0_4 = arith.constant 0 : index
    %6 = vector.load %arg3[%c0_3, %c0_4] : memref<32x512xf32, #tpu.memory_space<vmem>>, vector<32x512xf32>
    tpu.vector_store %arg3[%c0_3, %c0_4], %5 {strides = array<i32>} : memref<32x512xf32, #tpu.memory_space<vmem>>, vector<32x512xf32>,
    %7 = arith.mulf %0, %0 : vector<32x512xf32>
    %cst_5 = arith.constant 1.000000e+00 : f32
    %8 = vector.broadcast %cst_5 : f32 to vector<32x512xf32>
    %9 = arith.addf %7, %8 : vector<32x512xf32>
    %10 = arith.mulf %1, %9 : vector<32x512xf32>
    %c0_6 = arith.constant 0 : index
    %c0_7 = arith.constant 0 : index
    %11 = vector.load %arg4[%c0_6, %c0_7] : memref<32x512xf32, #tpu.memory_space<vmem>>, vector<32x512xf32>
    tpu.vector_store %arg4[%c0_6, %c0_7], %10 {strides = array<i32>} : memref<32x512xf32, #tpu.memory_space<vmem>>, vector<32x512xf32>,
    return
  }
  func.func @transform_0(%arg0: i32) -> (i32, i32) {
    %c0_i32 = arith.constant 0 : i32
    %c0_i32_0 = arith.constant 0 : i32
    return %arg0, %c0_i32 : i32, i32
  }
  func.func @transform_1(%arg0: i32) -> (i32, i32) {
    %c0_i32 = arith.constant 0 : i32
    %c0_i32_0 = arith.constant 0 : i32
    return %arg0, %c0_i32 : i32, i32
  }
  func.func @transform_2(%arg0: i32) -> (i32, i32) {
    %c0_i32 = arith.constant 0 : i32
    %c0_i32_0 = arith.constant 0 : i32
    return %arg0, %c0_i32 : i32, i32
  }
  func.func @transform_3(%arg0: i32) -> (i32, i32) {
    %c0_i32 = arith.constant 0 : i32
    %c0_i32_0 = arith.constant 0 : i32
    return %arg0, %c0_i32 : i32, i32
  }
}

</mosaic_0001>

<llo_original>
// kernel: tpu_custom_call.1
$region0: #{tpu_custom_call.1}
  #allocation0 [shape = 'u32[]', space=smem, size = 0x4, offset = 0x4, fixed_abs, tag = 'smem constant byte address 0x4 - core index']
  #allocation1 [shape = 'u32[144,128]{1,0:T(1,128)}', space=vmem, size = 0x12000, scoped, tag = 'internal scratch']
  %s0 = inlined_call_operand.hbm [shape: f32[64,512], index: 0, kind: input, shape index: {}]
  %s1 = inlined_call_operand.hbm [shape: f32[64,512], index: 1, kind: input, shape index: {}]
  %s2 = inlined_call_operand.hbm [shape: f32[64,512], index: 2, kind: output, shape index: {0}]
  %s3 = inlined_call_operand.hbm [shape: f32[64,512], index: 3, kind: output, shape index: {1}]
  %4 = xla_tuple %s2, %s3
  %s5 = sld [smem:[#allocation0]]
  $region57: #{tpu_custom_call.1} parent=0
    _
  %s7 = ssub.s32 1, %s5
  %s8 = scalar_select 0, %s7, %s5
  $region1: #{tpu_custom_call.1} parent=0
    #allocation2 [shape = 'u8[131072]{0}', space=vmem, size = 0x20000, scoped, tag = 'input window, operand 0']
    #allocation3 [shape = 's32[2]{0}', space=sflag, size = 0x8, scoped, tag = 'scoped memory for tpu_custom_call.1']
    #allocation4 [shape = 's32[2]{0}', space=sflag, size = 0x8, scoped, tag = 'scoped memory for tpu_custom_call.1']
    #allocation5 [shape = 'u8[131072]{0}', space=vmem, size = 0x20000, scoped, tag = 'input window, operand 1']
    #allocation6 [shape = 's32[2]{0}', space=sflag, size = 0x8, scoped, tag = 'scoped memory for tpu_custom_call.1']
    #allocation7 [shape = 'u8[131072]{0}', space=vmem, size = 0x20000, scoped, tag = 'output window, operand 0']
    #allocation8 [shape = 'u8[131072]{0}', space=vmem, size = 0x20000, scoped, tag = 'output window, operand 1']
    #allocation9 [shape = 's32[2]{0}', space=sflag, size = 0x8, scoped, tag = 'scoped memory for tpu_custom_call.1']
    %9 = vsyncpa [#allocation3], 0
    %s10 = scalar_lea.sflag [#allocation3], 1
    %11 = vsyncpa %s10, 0
    %12 = vsyncpa [#allocation6], 0
    %s13 = scalar_lea.sflag [#allocation6], 1
    %14 = vsyncpa %s13, 0
    %15 = vsyncpa [#allocation4], 0
    %s16 = scalar_lea.sflag [#allocation4], 1
    %17 = vsyncpa %s16, 0
    %18 = vsyncpa [#allocation9], 0
    %s19 = scalar_lea.sflag [#allocation9], 1
    %20 = vsyncpa %s19, 0
    loop: start=0, step=1, limit=4
    $region2: #{tpu_custom_call.1} parent=1 // loop_pre_header
      _
    $region3: #{tpu_custom_call.1} parent=1 // loop_header
      %s22 = sphi 0, %s26
      %p23 = scmp.ge.s32.totalorder %s22, 4
      %s32 = sphi 0, %s34
      %s35 = sphi 0, %s32
      %s36 = sphi 0, %s35
      %s52 = sphi 0, %s36
      %s58 = sphi 0, %s60
      %s61 = sphi 0, %s58
      %s62 = sphi 0, %s61
      %s78 = sphi 0, %s62
      %s84 = sphi 0, %s86
      %s87 = sphi 0, %s84
      %s88 = sphi 0, %s87
      %s104 = sphi 0, %s88
      %s110 = sphi 0, %s112
      %s113 = sphi 0, %s110
      %s114 = sphi 0, %s113
      %s130 = sphi 0, %s114
    $region4: #{tpu_custom_call.1} parent=1 // loop_header_branch
      %25 = sbr.rel (%p23) target = $region8
    $region5: #{tpu_custom_call.1} parent=1 // loop_body
      %s27 = ssub.s32 %s22, 1
      %s28 = ssub.s32 %s22, 2
      %s29 = sadd.s32 %s22, 1
      %s30 = ssub.s32 %s22, %s29
      %p31 = scmp.eq.s32.totalorder %s30, 0
      %s33 = sadd.s32 %s32, 1
      %s34 = scalar_select %p31, %s32, %s33
      %p37 = pneg %p31
      %p38 = scmp.eq.s32.totalorder %s22, 1
      %p39 = por %p37, %p38
      %p40 = scmp.ne.s32.totalorder %s32, %s35
      %p41 = scmp.eq.s32.totalorder %s22, 0
      %p42 = por %p40, %p41
      %p43 = scmp.ne.s32.totalorder %s32, %s35
      %p44 = scmp.eq.s32.totalorder %s27, 1
      %p45 = por %p43, %p44
      %p46 = scmp.ne.s32.totalorder %s35, %s36
      %p47 = scmp.eq.s32.totalorder %s27, 0
      %p48 = por %p46, %p47
      %p49 = scmp.ne.s32.totalorder %s35, %s36
      %p50 = scmp.eq.s32.totalorder %s28, 1
      %p51 = por %p49, %p50
      %p53 = scmp.ne.s32.totalorder %s36, %s52
      %p54 = scmp.eq.s32.totalorder %s28, 0
      %p55 = por %p53, %p54
      %s56 = ssub.s32 %s22, %s29
      %p57 = scmp.eq.s32.totalorder %s56, 0
      %s59 = sadd.s32 %s58, 1
      %s60 = scalar_select %p57, %s58, %s59
      %p63 = pneg %p57
      %p64 = scmp.eq.s32.totalorder %s22, 1
      %p65 = por %p63, %p64
      %p66 = scmp.ne.s32.totalorder %s58, %s61
      %p67 = scmp.eq.s32.totalorder %s22, 0
      %p68 = por %p66, %p67
      %p69 = scmp.ne.s32.totalorder %s58, %s61
      %p70 = scmp.eq.s32.totalorder %s27, 1
      %p71 = por %p69, %p70
      %p72 = scmp.ne.s32.totalorder %s61, %s62
      %p73 = scmp.eq.s32.totalorder %s27, 0
      %p74 = por %p72, %p73
      %p75 = scmp.ne.s32.totalorder %s61, %s62
      %p76 = scmp.eq.s32.totalorder %s28, 1
      %p77 = por %p75, %p76
      %p79 = scmp.ne.s32.totalorder %s62, %s78
      %p80 = scmp.eq.s32.totalorder %s28, 0
      %p81 = por %p79, %p80
      %s82 = ssub.s32 %s22, %s29
      %p83 = scmp.eq.s32.totalorder %s82, 0
      %s85 = sadd.s32 %s84, 1
      %s86 = scalar_select %p83, %s84, %s85
      %p89 = pneg %p83
      %p90 = scmp.eq.s32.totalorder %s22, 1
      %p91 = por %p89, %p90
      %p92 = scmp.ne.s32.totalorder %s84, %s87
      %p93 = scmp.eq.s32.totalorder %s22, 0
      %p94 = por %p92, %p93
      %p95 = scmp.ne.s32.totalorder %s84, %s87
      %p96 = scmp.eq.s32.totalorder %s27, 1
      %p97 = por %p95, %p96
      %p98 = scmp.ne.s32.totalorder %s87, %s88
      %p99 = scmp.eq.s32.totalorder %s27, 0
      %p100 = por %p98, %p99
      %p101 = scmp.ne.s32.totalorder %s87, %s88
      %p102 = scmp.eq.s32.totalorder %s28, 1
      %p103 = por %p101, %p102
      %p105 = scmp.ne.s32.totalorder %s88, %s104
      %p106 = scmp.eq.s32.totalorder %s28, 0
      %p107 = por %p105, %p106
      %s108 = ssub.s32 %s22, %s29
      %p109 = scmp.eq.s32.totalorder %s108, 0
      %s111 = sadd.s32 %s110, 1
      %s112 = scalar_select %p109, %s110, %s111
      %p115 = pneg %p109
      %p116 = scmp.eq.s32.totalorder %s22, 1
      %p117 = por %p115, %p116
      %p118 = scmp.ne.s32.totalorder %s110, %s113
      %p119 = scmp.eq.s32.totalorder %s22, 0
      %p120 = por %p118, %p119
      %p121 = scmp.ne.s32.totalorder %s110, %s113
      %p122 = scmp.eq.s32.totalorder %s27, 1
      %p123 = por %p121, %p122
      %p124 = scmp.ne.s32.totalorder %s113, %s114
      %p125 = scmp.eq.s32.totalorder %s27, 0
      %p126 = por %p124, %p125
      %p127 = scmp.ne.s32.totalorder %s113, %s114
      %p128 = scmp.eq.s32.totalorder %s28, 1
      %p129 = por %p127, %p128
      %p131 = scmp.ne.s32.totalorder %s114, %s130
      %p132 = scmp.eq.s32.totalorder %s28, 0
      %p133 = por %p131, %p132
      %p134 = scmp.le.s32.totalorder 1, %s22
      %p135 = scmp.lt.s32.totalorder %s22, 3
      %p136 = pnand %p134, %p135
      %p137 = pneg %p136
      // Predicated region
      $region9: #{tpu_custom_call.1} parent=5 // pred_check
        _
      $region10: #{tpu_custom_call.1} parent=5 // pred_check_branch
        %139 = sbr.rel (%p136) target = $region12
      $region11: #{tpu_custom_call.1} parent=5 // pred_region
        %s140 = ssub.s32 %s22, 1
      $region12: #{tpu_custom_call.1} parent=5 // pred_fallthru
        _
      %p141 = scmp.lt.s32.totalorder %s22, 2
      // Predicated region
      $region13: #{tpu_custom_call.1} parent=5 // pred_check
        %p142 = pneg %p141
      $region14: #{tpu_custom_call.1} parent=5 // pred_check_branch
        %144 = sbr.rel (%p142) target = $region16
      $region15: #{tpu_custom_call.1} parent=5 // pred_region
        // Predicated region
        $region17: #{tpu_custom_call.1} parent=15 // pred_check
          %p145 = pneg %p42
        $region18: #{tpu_custom_call.1} parent=15 // pred_check_branch
          %147 = sbr.rel (%p145) target = $region20
        $region19: #{tpu_custom_call.1} parent=15 // pred_region
          %s148 = sand.u32 %s32, 1
          %s149 = scalar_lea.sflag [#allocation3], %s148
          %s150 = sand.u32 %s32, 1
          %s151 = smul.addr %s150, 128
          %s152 = scalar_lea.vmem [#allocation2], %s151
          %s153 = smul.u32 4, %s22
          %s155 = ssub.s32 2048, 2048
          %156 = vsyncadd %s149, %s155
          %s157 = smul.addr %s153, 4
          %s158 = smul.addr %s157, 128
          %s159 = scalar_lea.hbm %s0, %s158
          %s160 = sshll.u32 %s152, 4
          %s161 = int_to_ptr.vmem [resolvable:$true] %s160
          %166 = dma.hbm_to_vmem [thread:$0]  %s159, 2048, %s161, %s149, 512, 512, 32
        $region20: #{tpu_custom_call.1} parent=15 // pred_fallthru
          _
        // Predicated region
        $region21: #{tpu_custom_call.1} parent=15 // pred_check
          %p167 = pneg %p68
        $region22: #{tpu_custom_call.1} parent=15 // pred_check_branch
          %169 = sbr.rel (%p167) target = $region24
        $region23: #{tpu_custom_call.1} parent=15 // pred_region
          %s170 = sand.u32 %s58, 1
          %s171 = scalar_lea.sflag [#allocation6], %s170
          %s172 = sand.u32 %s58, 1
          %s173 = smul.addr %s172, 128
          %s174 = scalar_lea.vmem [#allocation5], %s173
          %s175 = smul.u32 4, %s22
          %s177 = ssub.s32 2048, 2048
          %178 = vsyncadd %s171, %s177
          %s179 = smul.addr %s175, 4
          %s180 = smul.addr %s179, 128
          %s181 = scalar_lea.hbm %s1, %s180
          %s182 = sshll.u32 %s174, 4
          %s183 = int_to_ptr.vmem [resolvable:$true] %s182
          %188 = dma.hbm_to_vmem [thread:$0]  %s181, 2048, %s183, %s171, 512, 512, 32
        $region24: #{tpu_custom_call.1} parent=15 // pred_fallthru
          _
      $region16: #{tpu_custom_call.1} parent=5 // pred_fallthru
        _
      %p189 = scmp.le.s32.totalorder 1, %s22
      %p190 = scmp.lt.s32.totalorder %s22, 3
      %p191 = pnand %p189, %p190
      %p192 = pneg %p191
      // Predicated region
      $region25: #{tpu_custom_call.1} parent=5 // pred_check
        _
      $region26: #{tpu_custom_call.1} parent=5 // pred_check_branch
        %194 = sbr.rel (%p191) target = $region28
      $region27: #{tpu_custom_call.1} parent=5 // pred_region
        %s195 = ssub.s32 %s22, 1
        %s196 = sand.u32 %s35, 1
        %s197 = scalar_lea.sflag [#allocation3], %s196
        %s198 = sand.u32 %s35, 1
        %s199 = smul.addr %s198, 128
        %s200 = scalar_lea.vmem [#allocation2], %s199
        // Predicated region
        $region29: #{tpu_custom_call.1} parent=27 // pred_check
          %p201 = pneg %p48
        $region30: #{tpu_custom_call.1} parent=27 // pred_check_branch
          %203 = sbr.rel (%p201) target = $region32
        $region31: #{tpu_custom_call.1} parent=27 // pred_region
          %204 = dma.done %s197, 2048
        $region32: #{tpu_custom_call.1} parent=27 // pred_fallthru
          _
        %s205 = sand.u32 %s61, 1
        %s206 = scalar_lea.sflag [#allocation6], %s205
        %s207 = sand.u32 %s61, 1
        %s208 = smul.addr %s207, 128
        %s209 = scalar_lea.vmem [#allocation5], %s208
        // Predicated region
        $region33: #{tpu_custom_call.1} parent=27 // pred_check
          %p210 = pneg %p74
        $region34: #{tpu_custom_call.1} parent=27 // pred_check_branch
          %212 = sbr.rel (%p210) target = $region36
        $region35: #{tpu_custom_call.1} parent=27 // pred_region
          %213 = dma.done %s206, 2048
        $region36: #{tpu_custom_call.1} parent=27 // pred_fallthru
          _
        %s214 = sand.u32 %s35, 1
        %s215 = scalar_lea.sflag [#allocation3], %s214
        %s216 = sand.u32 %s35, 1
        %s217 = smul.addr %s216, 128
        %s218 = scalar_lea.vmem [#allocation2], %s217
        %p219 = pneg %p48
        %p220 = pneg %p45
        %s221 = sand.u32 %s61, 1
        %s222 = scalar_lea.sflag [#allocation6], %s221
        %s223 = sand.u32 %s61, 1
        %s224 = smul.addr %s223, 128
        %s225 = scalar_lea.vmem [#allocation5], %s224
        %p226 = pneg %p74
        %p227 = pneg %p71
        %p228 = pneg %p100
        %p229 = pneg %p97
        %s230 = sand.u32 %s87, 1
        %s231 = scalar_lea.sflag [#allocation4], %s230
        %s232 = sand.u32 %s87, 1
        %s233 = smul.addr %s232, 128
        %s234 = scalar_lea.vmem [#allocation7], %s233
        %p235 = pneg %p126
        %p236 = pneg %p123
        %s237 = sand.u32 %s113, 1
        %s238 = scalar_lea.sflag [#allocation9], %s237
        %s239 = sand.u32 %s113, 1
        %s240 = smul.addr %s239, 128
        %s241 = scalar_lea.vmem [#allocation8], %s240
        %s242 = smul.u32 4, %s27
        %s243 = smul.u32 4, %s27
        %s244 = smul.u32 4, %s27
        %s245 = smul.u32 4, %s27
        %v246 = vld [vmem:[%s200] sm:$0xff]
        %v247 = vld [vmem:[%s200 + $0x8] sm:$0xff]
        %v248 = vld [vmem:[%s200 + $0x10] sm:$0xff]
        %v249 = vld [vmem:[%s200 + $0x18] sm:$0xff]
        %v250 = vld [vmem:[%s200 + $0x20] sm:$0xff]
        %v251 = vld [vmem:[%s200 + $0x28] sm:$0xff]
        %v252 = vld [vmem:[%s200 + $0x30] sm:$0xff]
        %v253 = vld [vmem:[%s200 + $0x38] sm:$0xff]
        %v254 = vld [vmem:[%s200 + $0x40] sm:$0xff]
        %v255 = vld [vmem:[%s200 + $0x48] sm:$0xff]
        %v256 = vld [vmem:[%s200 + $0x50] sm:$0xff]
        %v257 = vld [vmem:[%s200 + $0x58] sm:$0xff]
        %v258 = vld [vmem:[%s200 + $0x60] sm:$0xff]
        %v259 = vld [vmem:[%s200 + $0x68] sm:$0xff]
        %v260 = vld [vmem:[%s200 + $0x70] sm:$0xff]
        %v261 = vld [vmem:[%s200 + $0x78] sm:$0xff]
        %v262 = vld [vmem:[%s209] sm:$0xff]
        %v263 = vld [vmem:[%s209 + $0x8] sm:$0xff]
        %v264 = vld [vmem:[%s209 + $0x10] sm:$0xff]
        %v265 = vld [vmem:[%s209 + $0x18] sm:$0xff]
        %v266 = vld [vmem:[%s209 + $0x20] sm:$0xff]
        %v267 = vld [vmem:[%s209 + $0x28] sm:$0xff]
        %v268 = vld [vmem:[%s209 + $0x30] sm:$0xff]
        %v269 = vld [vmem:[%s209 + $0x38] sm:$0xff]
        %v270 = vld [vmem:[%s209 + $0x40] sm:$0xff]
        %v271 = vld [vmem:[%s209 + $0x48] sm:$0xff]
        %v272 = vld [vmem:[%s209 + $0x50] sm:$0xff]
        %v273 = vld [vmem:[%s209 + $0x58] sm:$0xff]
        %v274 = vld [vmem:[%s209 + $0x60] sm:$0xff]
        %v275 = vld [vmem:[%s209 + $0x68] sm:$0xff]
        %v276 = vld [vmem:[%s209 + $0x70] sm:$0xff]
        %v277 = vld [vmem:[%s209 + $0x78] sm:$0xff]
        %v278 = vmul.f32 %v262, %v262
        %v279 = vmul.f32 %v263, %v263
        %v280 = vmul.f32 %v264, %v264
        %v281 = vmul.f32 %v265, %v265
        %v282 = vmul.f32 %v266, %v266
        %v283 = vmul.f32 %v267, %v267
        %v284 = vmul.f32 %v268, %v268
        %v285 = vmul.f32 %v269, %v269
        %v286 = vmul.f32 %v270, %v270
        %v287 = vmul.f32 %v271, %v271
        %v288 = vmul.f32 %v272, %v272
        %v289 = vmul.f32 %v273, %v273
        %v290 = vmul.f32 %v274, %v274
        %v291 = vmul.f32 %v275, %v275
        %v292 = vmul.f32 %v276, %v276
        %v293 = vmul.f32 %v277, %v277
        %v294 = vadd.f32 %v278, 1.0
        %v295 = vadd.f32 %v279, 1.0
        %v296 = vadd.f32 %v280, 1.0
        %v297 = vadd.f32 %v281, 1.0
        %v298 = vadd.f32 %v282, 1.0
        %v299 = vadd.f32 %v283, 1.0
        %v300 = vadd.f32 %v284, 1.0
        %v301 = vadd.f32 %v285, 1.0
        %v302 = vadd.f32 %v286, 1.0
        %v303 = vadd.f32 %v287, 1.0
        %v304 = vadd.f32 %v288, 1.0
        %v305 = vadd.f32 %v289, 1.0
        %v306 = vadd.f32 %v290, 1.0
        %v307 = vadd.f32 %v291, 1.0
        %v308 = vadd.f32 %v292, 1.0
        %v309 = vadd.f32 %v293, 1.0
        %v310 = vmul.f32 %v246, %v294
        %v311 = vmul.f32 %v247, %v295
        %v312 = vmul.f32 %v248, %v296
        %v313 = vmul.f32 %v249, %v297
        %v314 = vmul.f32 %v250, %v298
        %v315 = vmul.f32 %v251, %v299
        %v316 = vmul.f32 %v252, %v300
        %v317 = vmul.f32 %v253, %v301
        %v318 = vmul.f32 %v254, %v302
        %v319 = vmul.f32 %v255, %v303
        %v320 = vmul.f32 %v256, %v304
        %v321 = vmul.f32 %v257, %v305
        %v322 = vmul.f32 %v258, %v306
        %v323 = vmul.f32 %v259, %v307
        %v324 = vmul.f32 %v260, %v308
        %v325 = vmul.f32 %v261, %v309
        %326 = vst [vmem:[%s234] sm:$0xff] %v310
        %327 = vst [vmem:[%s234 + $0x8] sm:$0xff] %v311
        %328 = vst [vmem:[%s234 + $0x10] sm:$0xff] %v312
        %329 = vst [vmem:[%s234 + $0x18] sm:$0xff] %v313
        %330 = vst [vmem:[%s234 + $0x20] sm:$0xff] %v314
        %331 = vst [vmem:[%s234 + $0x28] sm:$0xff] %v315
        %332 = vst [vmem:[%s234 + $0x30] sm:$0xff] %v316
        %333 = vst [vmem:[%s234 + $0x38] sm:$0xff] %v317
        %334 = vst [vmem:[%s234 + $0x40] sm:$0xff] %v318
        %335 = vst [vmem:[%s234 + $0x48] sm:$0xff] %v319
        %336 = vst [vmem:[%s234 + $0x50] sm:$0xff] %v320
        %337 = vst [vmem:[%s234 + $0x58] sm:$0xff] %v321
        %338 = vst [vmem:[%s234 + $0x60] sm:$0xff] %v322
        %339 = vst [vmem:[%s234 + $0x68] sm:$0xff] %v323
        %340 = vst [vmem:[%s234 + $0x70] sm:$0xff] %v324
        %341 = vst [vmem:[%s234 + $0x78] sm:$0xff] %v325
        %v342 = vmul.f32 %v246, %v246
        %v343 = vmul.f32 %v247, %v247
        %v344 = vmul.f32 %v248, %v248
        %v345 = vmul.f32 %v249, %v249
        %v346 = vmul.f32 %v250, %v250
        %v347 = vmul.f32 %v251, %v251
        %v348 = vmul.f32 %v252, %v252
        %v349 = vmul.f32 %v253, %v253
        %v350 = vmul.f32 %v254, %v254
        %v351 = vmul.f32 %v255, %v255
        %v352 = vmul.f32 %v256, %v256
        %v353 = vmul.f32 %v257, %v257
        %v354 = vmul.f32 %v258, %v258
        %v355 = vmul.f32 %v259, %v259
        %v356 = vmul.f32 %v260, %v260
        %v357 = vmul.f32 %v261, %v261
        %v358 = vadd.f32 %v342, 1.0
        %v359 = vadd.f32 %v343, 1.0
        %v360 = vadd.f32 %v344, 1.0
        %v361 = vadd.f32 %v345, 1.0
        %v362 = vadd.f32 %v346, 1.0
        %v363 = vadd.f32 %v347, 1.0
        %v364 = vadd.f32 %v348, 1.0
        %v365 = vadd.f32 %v349, 1.0
        %v366 = vadd.f32 %v350, 1.0
        %v367 = vadd.f32 %v351, 1.0
        %v368 = vadd.f32 %v352, 1.0
        %v369 = vadd.f32 %v353, 1.0
        %v370 = vadd.f32 %v354, 1.0
        %v371 = vadd.f32 %v355, 1.0
        %v372 = vadd.f32 %v356, 1.0
        %v373 = vadd.f32 %v357, 1.0
        %v374 = vmul.f32 %v262, %v358
        %v375 = vmul.f32 %v263, %v359
        %v376 = vmul.f32 %v264, %v360
        %v377 = vmul.f32 %v265, %v361
        %v378 = vmul.f32 %v266, %v362
        %v379 = vmul.f32 %v267, %v363
        %v380 = vmul.f32 %v268, %v364
        %v381 = vmul.f32 %v269, %v365
        %v382 = vmul.f32 %v270, %v366
        %v383 = vmul.f32 %v271, %v367
        %v384 = vmul.f32 %v272, %v368
        %v385 = vmul.f32 %v273, %v369
        %v386 = vmul.f32 %v274, %v370
        %v387 = vmul.f32 %v275, %v371
        %v388 = vmul.f32 %v276, %v372
        %v389 = vmul.f32 %v277, %v373
        %390 = vst [vmem:[%s241] sm:$0xff] %v374
        %391 = vst [vmem:[%s241 + $0x8] sm:$0xff] %v375
        %392 = vst [vmem:[%s241 + $0x10] sm:$0xff] %v376
        %393 = vst [vmem:[%s241 + $0x18] sm:$0xff] %v377
        %394 = vst [vmem:[%s241 + $0x20] sm:$0xff] %v378
        %395 = vst [vmem:[%s241 + $0x28] sm:$0xff] %v379
        %396 = vst [vmem:[%s241 + $0x30] sm:$0xff] %v380
        %397 = vst [vmem:[%s241 + $0x38] sm:$0xff] %v381
        %398 = vst [vmem:[%s241 + $0x40] sm:$0xff] %v382
        %399 = vst [vmem:[%s241 + $0x48] sm:$0xff] %v383
        %400 = vst [vmem:[%s241 + $0x50] sm:$0xff] %v384
        %401 = vst [vmem:[%s241 + $0x58] sm:$0xff] %v385
        %402 = vst [vmem:[%s241 + $0x60] sm:$0xff] %v386
        %403 = vst [vmem:[%s241 + $0x68] sm:$0xff] %v387
        %404 = vst [vmem:[%s241 + $0x70] sm:$0xff] %v388
        %405 = vst [vmem:[%s241 + $0x78] sm:$0xff] %v389
        %s406 = sand.u32 %s87, 1
        %s407 = scalar_lea.sflag [#allocation4], %s406
        %s408 = sand.u32 %s87, 1
        %s409 = smul.addr %s408, 128
        %s410 = scalar_lea.vmem [#allocation7], %s409
        %s411 = sand.u32 %s113, 1
        %s412 = scalar_lea.sflag [#allocation9], %s411
        %s413 = sand.u32 %s113, 1
        %s414 = smul.addr %s413, 128
        %s415 = scalar_lea.vmem [#allocation8], %s414
        // Predicated region
        $region37: #{tpu_custom_call.1} parent=27 // pred_check
          %p416 = pneg %p97
        $region38: #{tpu_custom_call.1} parent=27 // pred_check_branch
          %418 = sbr.rel (%p416) target = $region40
        $region39: #{tpu_custom_call.1} parent=27 // pred_region
          %s419 = smul.u32 4, %s27
          %s421 = ssub.s32 2048, 2048
          %422 = vsyncadd %s407, %s421
          %s423 = smul.addr %s419, 4
          %s424 = smul.addr %s423, 128
          %s425 = scalar_lea.hbm %s2, %s424
          %s426 = sshll.u32 %s410, 4
          %s427 = int_to_ptr.vmem [resolvable:$true] %s426
          %432 = dma.vmem_to_hbm [thread:$0]  %s427, 2048, %s425, %s407, 512, 512, 32
        $region40: #{tpu_custom_call.1} parent=27 // pred_fallthru
          _
        // Predicated region
        $region41: #{tpu_custom_call.1} parent=27 // pred_check
          %p433 = pneg %p123
        $region42: #{tpu_custom_call.1} parent=27 // pred_check_branch
          %435 = sbr.rel (%p433) target = $region44
        $region43: #{tpu_custom_call.1} parent=27 // pred_region
          %s436 = smul.u32 4, %s27
          %s438 = ssub.s32 2048, 2048
          %439 = vsyncadd %s412, %s438
          %s440 = smul.addr %s436, 4
          %s441 = smul.addr %s440, 128
          %s442 = scalar_lea.hbm %s3, %s441
          %s443 = sshll.u32 %s415, 4
          %s444 = int_to_ptr.vmem [resolvable:$true] %s443
          %449 = dma.vmem_to_hbm [thread:$0]  %s444, 2048, %s442, %s412, 512, 512, 32
        $region44: #{tpu_custom_call.1} parent=27 // pred_fallthru
          _
      $region28: #{tpu_custom_call.1} parent=5 // pred_fallthru
        _
      %p450 = scmp.le.s32.totalorder 2, %s22
      // Predicated region
      $region45: #{tpu_custom_call.1} parent=5 // pred_check
        %p451 = pneg %p450
      $region46: #{tpu_custom_call.1} parent=5 // pred_check_branch
        %453 = sbr.rel (%p451) target = $region48
      $region47: #{tpu_custom_call.1} parent=5 // pred_region
        %s454 = ssub.s32 %s22, 2
        // Predicated region
        $region49: #{tpu_custom_call.1} parent=47 // pred_check
          %p455 = pneg %p103
        $region50: #{tpu_custom_call.1} parent=47 // pred_check_branch
          %457 = sbr.rel (%p455) target = $region52
        $region51: #{tpu_custom_call.1} parent=47 // pred_region
          %s458 = sand.u32 %s88, 1
          %s459 = scalar_lea.sflag [#allocation4], %s458
          %s460 = sand.u32 %s88, 1
          %s461 = smul.addr %s460, 128
          %s462 = scalar_lea.vmem [#allocation7], %s461
          %463 = dma.done %s459, 2048
        $region52: #{tpu_custom_call.1} parent=47 // pred_fallthru
          _
        // Predicated region
        $region53: #{tpu_custom_call.1} parent=47 // pred_check
          %p464 = pneg %p129
        $region54: #{tpu_custom_call.1} parent=47 // pred_check_branch
          %466 = sbr.rel (%p464) target = $region56
        $region55: #{tpu_custom_call.1} parent=47 // pred_region
          %s467 = sand.u32 %s114, 1
          %s468 = scalar_lea.sflag [#allocation9], %s467
          %s469 = sand.u32 %s114, 1
          %s470 = smul.addr %s469, 128
          %s471 = scalar_lea.vmem [#allocation8], %s470
          %472 = dma.done %s468, 2048
        $region56: #{tpu_custom_call.1} parent=47 // pred_fallthru
          _
      $region48: #{tpu_custom_call.1} parent=5 // pred_fallthru
        _
    $region6: #{tpu_custom_call.1} parent=1 // loop_footer
      %s26 = sadd.s32 1, %s22
    $region7: #{tpu_custom_call.1} parent=1 // loop_footer_branch
      %21 = sbr.rel target = $region3
    $region8: #{tpu_custom_call.1} parent=1 // loop_exit
      _
    %473 = vsyncpa [#allocation3], 1
    %s474 = scalar_lea.sflag [#allocation3], 1
    %475 = vsyncpa %s474, 1
    %476 = vsyncpa [#allocation6], 1
    %s477 = scalar_lea.sflag [#allocation6], 1
    %478 = vsyncpa %s477, 1
    %479 = vsyncpa [#allocation4], 1
    %s480 = scalar_lea.sflag [#allocation4], 1
    %481 = vsyncpa %s480, 1
    %482 = vsyncpa [#allocation9], 1
    %s483 = scalar_lea.sflag [#allocation9], 1
    %484 = vsyncpa %s483, 1

</llo_original>
